<compile_context>
chip_gen: v5e
topology: v5e:2x2
jax: 0.10.0
libtpu: 0.0.40
codegen_flags: <defaults>
</compile_context>

<pallas_src>
import jax
import jax.numpy as jnp
from jax import lax
from jax.experimental import pallas as pl
from jax.experimental.pallas import tpu as pltpu

LANES = 128
SUBLANES = 8
UNROLL = 4


def _pow(v, power):
    if power == 1:
        return v
    return v ** power


def _strip_loop(n_steps, body, init, unroll=UNROLL):
    """fori_loop with static trip count; tiny counts are Python-unrolled."""
    if n_steps <= 0:
        return init
    if n_steps <= unroll:
        acc = init
        for k in range(n_steps):
            acc = body(k, acc)
        return acc
    return lax.fori_loop(0, n_steps, body, init, unroll=unroll)


def _r0(k, step):
    if isinstance(k, int):
        return k * step
    return pl.multiple_of(k * step, step)


def _make_kernel(power, tile_rows, strip_rows, valid_rows_last):
    """Streaming sum((x**p - y**p)**2) into a resident (8,128) f32 accumulator.

    tile_rows, strip_rows are multiples of 8; strip_rows divides tile_rows.
    valid_rows_last = number of valid rows in the final (possibly partial) block.
    """
    n_strips_hot = tile_rows // strip_rows
    ragged = valid_rows_last != tile_rows
    full_cold_strips = valid_rows_last // SUBLANES       # unmasked 8-row strips
    tail_rows = valid_rows_last - full_cold_strips * SUBLANES  # 0..7 masked rows

    def strip_d2(x_ref, y_ref, r0, nrows):
        x = x_ref[pl.ds(r0, nrows), :].astype(jnp.float32)
        y = y_ref[pl.ds(r0, nrows), :].astype(jnp.float32)
        d = _pow(x, power) - _pow(y, power)
        return d * d

    def fold(d2, nrows):
        # (nrows,128) -> (8,128): add vreg-aligned 8-row groups (VPU only).
        acc = d2[0:SUBLANES]
        for r in range(SUBLANES, nrows, SUBLANES):
            acc = acc + d2[r:r + SUBLANES]
        return acc

    def kernel(x_ref, y_ref, o_ref):
        blk = pl.program_id(0)
        nblk = pl.num_programs(0)

        @pl.when(blk == 0)
        def _():
            o_ref[...] = jnp.zeros_like(o_ref)

        zero = jnp.zeros((SUBLANES, LANES), jnp.float32)

        def hot_body(k, acc):
            r0 = _r0(k, strip_rows)
            return acc + fold(strip_d2(x_ref, y_ref, r0, strip_rows), strip_rows)

        def run_hot():
            o_ref[...] += _strip_loop(n_strips_hot, hot_body, zero)

        if not ragged:
            run_hot()
        else:
            @pl.when(blk != nblk - 1)
            def _():
                run_hot()

            @pl.when(blk == nblk - 1)
            def _():
                def cold_body(k, acc):
                    r0 = _r0(k, SUBLANES)
                    return acc + strip_d2(x_ref, y_ref, r0, SUBLANES)

                acc = _strip_loop(full_cold_strips, cold_body, zero)
                if tail_rows:
                    # One masked 8-row strip; DMA-unfilled rows hold garbage but
                    # are selected away (select does not propagate inf/nan).
                    r0 = full_cold_strips * SUBLANES
                    d2 = strip_d2(x_ref, y_ref, r0, SUBLANES)
                    row = lax.broadcasted_iota(jnp.int32, (SUBLANES, LANES), 0)
                    acc = acc + jnp.where(row < tail_rows, d2, 0.0)
                o_ref[...] += acc

    return kernel


def mse_power(output, truth, power=2, block_bytes=4 * 1024 * 1024, strip_rows=64):
    """Pallas TPU equivalent of torch.norm(output**power - truth**power)."""
    assert output.shape == truth.shape, "shapes must match (broadcasting not supported)"
    n = int(output.size)
    if n == 0:
        return jnp.float32(0.0)

    xf = output.reshape(-1)
    yf = truth.reshape(-1)

    rows = n // LANES
    rem = n - rows * LANES
    n_body = rows * LANES

    # Epilogue sum for the <128-element lane tail (cheap, avoids padding n).
    tail = jnp.zeros((), jnp.float32)
    if rem:
        tx = xf[n_body:].astype(jnp.float32)
        ty = yf[n_body:].astype(jnp.float32)
        td = _pow(tx, power) - _pow(ty, power)
        tail = jnp.sum(td * td)

    if rows < SUBLANES:
        # Too small for the kernel (launch overhead dominates); finish in XLA.
        if rows:
            bx = xf[:n_body].astype(jnp.float32)
            by = yf[:n_body].astype(jnp.float32)
            bd = _pow(bx, power) - _pow(by, power)
            tail = tail + jnp.sum(bd * bd)
        return jnp.sqrt(tail)

    # Body as (rows, 128).  The prefix slice is a copy only when n % 128 != 0
    # (the lane-ragged case); for the common 128-divisible sizes it is free.
    if rem:
        xb = xf[:n_body]
        yb = yf[:n_body]
    else:
        xb, yb = xf, yf
    x2 = xb.reshape(rows, LANES)
    y2 = yb.reshape(rows, LANES)

    # Dtype-aware tile sizing: ~block_bytes per input block, multiple of 8 rows,
    # never larger than the data (last block may be partial -> masked cold path).
    itemsize = int(x2.dtype.itemsize)
    target_rows = max(strip_rows,
                      (block_bytes // (LANES * itemsize) // strip_rows) * strip_rows)
    tile_rows = min(target_rows, (rows // SUBLANES) * SUBLANES)
    strip = strip_rows if tile_rows % strip_rows == 0 else SUBLANES

    num_blocks = pl.cdiv(rows, tile_rows)
    valid_rows_last = rows - (num_blocks - 1) * tile_rows

    is_int_power = isinstance(power, int)
    cost = pl.CostEstimate(
        flops=6 * n,
        transcendentals=0 if is_int_power else 4 * n,   # x**p -> exp(p*log x)
        bytes_accessed=n_body * (int(x2.dtype.itemsize) + int(y2.dtype.itemsize))
        + SUBLANES * LANES * 4,
    )

    partial = pl.pallas_call(
        _make_kernel(power, tile_rows, strip, valid_rows_last),
        out_shape=jax.ShapeDtypeStruct((SUBLANES, LANES), jnp.float32),
        grid_spec=pltpu.PrefetchScalarGridSpec(
            num_scalar_prefetch=0,
            grid=(num_blocks,),
            in_specs=[
                pl.BlockSpec((tile_rows, LANES), lambda i: (i, 0)),
                pl.BlockSpec((tile_rows, LANES), lambda i: (i, 0)),
            ],
            out_specs=pl.BlockSpec((SUBLANES, LANES), lambda i: (0, 0)),
        ),
        compiler_params=pltpu.CompilerParams(
            dimension_semantics=("arbitrary",),
            vmem_limit_bytes=32 * 1024 * 1024,
        ),
        cost_estimate=cost,
    )(x2, y2)

    # Tiny epilogue in XLA: fold the (8,128) partial sums + lane tail, then sqrt.
    return jnp.sqrt(jnp.sum(partial) + tail)


def mse_power_ref(output, truth, power=2):
    d = output.astype(jnp.float32) ** power - truth.astype(jnp.float32) ** power
    return jnp.sqrt(jnp.sum(d * d))


if __name__ == "__main__":
    key = jax.random.PRNGKey(0)
    k1, k2 = jax.random.split(key)

    # NCHW, small synthetic example (2048 elements -> 16 full lane-rows).
    shape = (2, 4, 16, 16)
    output = jax.random.normal(k1, shape, dtype=jnp.float32)
    truth = jax.random.normal(k2, shape, dtype=jnp.float32)

    got = jax.block_until_ready(mse_power(output, truth, power=2))
    want = jax.block_until_ready(mse_power_ref(output, truth, power=2))
    assert jnp.allclose(got, want, rtol=1e-5, atol=1e-5), (got, want)

    # bf16 input + non-128-divisible size: exercises ragged last block (row mask)
    # and the lane-tail epilogue.
    shape2 = (3, 5, 7, 11)
    o2 = jax.random.normal(k1, shape2, dtype=jnp.bfloat16)
    t2 = jax.random.normal(k2, shape2, dtype=jnp.bfloat16)
    got2 = jax.block_until_ready(mse_power(o2, t2, power=2))
    want2 = jax.block_until_ready(mse_power_ref(o2, t2, power=2))
    assert jnp.allclose(got2, want2, rtol=2e-2, atol=2e-2), (got2, want2)

    print("KERNEL_OK")
</pallas_src>

<mosaic_0001>
module attributes {stable_mosaic.version = 11 : i64} {
  func.func @kernel(%arg0: i32, %arg1: memref<16x128xf32, #tpu.memory_space<vmem>>, %arg2: memref<16x128xf32, #tpu.memory_space<vmem>>, %arg3: memref<8x128xf32, #tpu.memory_space<vmem>>) attributes {dimension_semantics = [#tpu.dimension_semantics<arbitrary>], iteration_bounds = array<i64: 1>, scalar_prefetch = 0 : i64, scratch_operands = 0 : i64, tpu.core_type = #tpu.core_type<tc>, window_params = [{transform_indices = @transform_0, window_bounds = array<i64: 16, 128>}, {transform_indices = @transform_1, window_bounds = array<i64: 16, 128>}, {pipeline_mode = #tpu.pipeline_mode<synchronous>, transform_indices = @transform_2, window_bounds = array<i64: 8, 128>}]} {
    %c0_i32 = arith.constant 0 : i32
    %0 = arith.cmpi eq, %arg0, %c0_i32 : i32
    %1 = arith.extui %0 : i1 to i32
    %c0_i32_0 = arith.constant 0 : i32
    %2 = arith.cmpi ne, %1, %c0_i32_0 : i32
    scf.if %2 {
      %cst_11 = arith.constant 0.000000e+00 : f32
      %21 = vector.broadcast %cst_11 : f32 to vector<8x128xf32>
      %c0_12 = arith.constant 0 : index
      %c0_13 = arith.constant 0 : index
      %22 = vector.load %arg3[%c0_12, %c0_13] : memref<8x128xf32, #tpu.memory_space<vmem>>, vector<8x128xf32>
      tpu.vector_store %arg3[%c0_12, %c0_13], %21 {strides = array<i32>} : memref<8x128xf32, #tpu.memory_space<vmem>>, vector<8x128xf32>,
    } else {
    }
    %cst = arith.constant 0.000000e+00 : f32
    %3 = vector.broadcast %cst : f32 to vector<8x128xf32>
    %c0 = arith.constant 0 : index
    %c0_1 = arith.constant 0 : index
    %4 = vector.load %arg3[%c0, %c0_1] : memref<8x128xf32, #tpu.memory_space<vmem>>, vector<8x128xf32>
    %c0_2 = arith.constant 0 : index
    %c0_3 = arith.constant 0 : index
    %5 = vector.load %arg1[%c0_2, %c0_3] : memref<16x128xf32, #tpu.memory_space<vmem>>, vector<8x128xf32>
    %c0_4 = arith.constant 0 : index
    %c0_5 = arith.constant 0 : index
    %6 = vector.load %arg2[%c0_4, %c0_5] : memref<16x128xf32, #tpu.memory_space<vmem>>, vector<8x128xf32>
    %7 = arith.mulf %5, %5 : vector<8x128xf32>
    %8 = arith.mulf %6, %6 : vector<8x128xf32>
    %9 = arith.subf %7, %8 : vector<8x128xf32>
    %10 = arith.mulf %9, %9 : vector<8x128xf32>
    %11 = arith.addf %3, %10 : vector<8x128xf32>
    %c8 = arith.constant 8 : index
    %c0_6 = arith.constant 0 : index
    %12 = vector.load %arg1[%c8, %c0_6] : memref<16x128xf32, #tpu.memory_space<vmem>>, vector<8x128xf32>
    %c8_7 = arith.constant 8 : index
    %c0_8 = arith.constant 0 : index
    %13 = vector.load %arg2[%c8_7, %c0_8] : memref<16x128xf32, #tpu.memory_space<vmem>>, vector<8x128xf32>
    %14 = arith.mulf %12, %12 : vector<8x128xf32>
    %15 = arith.mulf %13, %13 : vector<8x128xf32>
    %16 = arith.subf %14, %15 : vector<8x128xf32>
    %17 = arith.mulf %16, %16 : vector<8x128xf32>
    %18 = arith.addf %11, %17 : vector<8x128xf32>
    %19 = arith.addf %4, %18 : vector<8x128xf32>
    %c0_9 = arith.constant 0 : index
    %c0_10 = arith.constant 0 : index
    %20 = vector.load %arg3[%c0_9, %c0_10] : memref<8x128xf32, #tpu.memory_space<vmem>>, vector<8x128xf32>
    tpu.vector_store %arg3[%c0_9, %c0_10], %19 {strides = array<i32>} : memref<8x128xf32, #tpu.memory_space<vmem>>, vector<8x128xf32>,
    return
  }
  func.func @transform_0(%arg0: i32) -> (i32, i32) {
    %c0_i32 = arith.constant 0 : i32
    %c0_i32_0 = arith.constant 0 : i32
    return %arg0, %c0_i32 : i32, i32
  }
  func.func @transform_1(%arg0: i32) -> (i32, i32) {
    %c0_i32 = arith.constant 0 : i32
    %c0_i32_0 = arith.constant 0 : i32
    return %arg0, %c0_i32 : i32, i32
  }
  func.func @transform_2(%arg0: i32) -> (i32, i32) {
    %c0_i32 = arith.constant 0 : i32
    %c0_i32_0 = arith.constant 0 : i32
    %c0_i32_1 = arith.constant 0 : i32
    return %c0_i32, %c0_i32_0 : i32, i32
  }
}

</mosaic_0001>

<llo_original>
// kernel: tpu_custom_call.1
$region0: #{tpu_custom_call.1}
  #allocation0 [shape = 'u32[]', space=smem, size = 0x4, offset = 0x4, fixed_abs, tag = 'smem constant byte address 0x4 - core index']
  #allocation1 [shape = 'u32[72,128]{1,0:T(1,128)}', space=vmem, size = 0x9000, scoped, tag = 'internal scratch']
  %s0 = inlined_call_operand.hbm [shape: f32[16,128], index: 0, kind: input, shape index: {}]
  %s1 = inlined_call_operand.hbm [shape: f32[16,128], index: 1, kind: input, shape index: {}]
  %s2 = inlined_call_operand.hbm [shape: f32[8,128], index: 2, kind: output, shape index: {}]
  %s3 = sld [smem:[#allocation0]]
  $region30: #{tpu_custom_call.1} parent=0
    _
  %s5 = ssub.s32 1, %s3
  %s6 = scalar_select 0, %s5, %s3
  $region1: #{tpu_custom_call.1} parent=0
    #allocation2 [shape = 'u8[8192]{0}', space=vmem, size = 0x2000, scoped, tag = 'input window, operand 0, single buffered']
    #allocation3 [shape = 's32[1]{0}', space=sflag, size = 0x4, scoped, tag = 'scoped memory for tpu_custom_call.1']
    #allocation4 [shape = 's32[1]{0}', space=sflag, size = 0x4, scoped, tag = 'scoped memory for tpu_custom_call.1']
    #allocation5 [shape = 'u8[8192]{0}', space=vmem, size = 0x2000, scoped, tag = 'input window, operand 1, single buffered']
    #allocation6 [shape = 's32[1]{0}', space=sflag, size = 0x4, scoped, tag = 'scoped memory for tpu_custom_call.1']
    #allocation7 [shape = 'u8[4096]{0}', space=vmem, size = 0x1000, scoped, tag = 'output window, operand 0, single buffered']
    %7 = vsyncpa [#allocation3], 0
    %8 = vsyncpa [#allocation6], 0
    %9 = vsyncpa [#allocation4], 0
    // Predicated region
    $region2: #{tpu_custom_call.1} parent=1 // pred_check
      _
    $region3: #{tpu_custom_call.1} parent=1 // pred_check_branch
      %11 = sbr.rel (0) target = $region5
    $region4: #{tpu_custom_call.1} parent=1 // pred_region
      %13 = vsyncadd [#allocation3], 0
      %s14 = sshll.u32 %s0, 4
      %s15 = int_to_ptr.hbm [resolvable:$true] %s14
      %s16 = sshll.u32 [#allocation2], 4
      %s17 = int_to_ptr.vmem [resolvable:$true] %s16
      %22 = dma.hbm_to_vmem [thread:$0]  %s15, 256, %s17, [#allocation3], 128, 128, 8
    $region5: #{tpu_custom_call.1} parent=1 // pred_fallthru
      _
    // Predicated region
    $region6: #{tpu_custom_call.1} parent=1 // pred_check
      _
    $region7: #{tpu_custom_call.1} parent=1 // pred_check_branch
      %24 = sbr.rel (0) target = $region9
    $region8: #{tpu_custom_call.1} parent=1 // pred_region
      %26 = vsyncadd [#allocation6], 0
      %s27 = sshll.u32 %s1, 4
      %s28 = int_to_ptr.hbm [resolvable:$true] %s27
      %s29 = sshll.u32 [#allocation5], 4
      %s30 = int_to_ptr.vmem [resolvable:$true] %s29
      %35 = dma.hbm_to_vmem [thread:$0]  %s28, 256, %s30, [#allocation6], 128, 128, 8
    $region9: #{tpu_custom_call.1} parent=1 // pred_fallthru
      _
    // Predicated region
    $region10: #{tpu_custom_call.1} parent=1 // pred_check
      _
    $region11: #{tpu_custom_call.1} parent=1 // pred_check_branch
      %37 = sbr.rel (0) target = $region13
    $region12: #{tpu_custom_call.1} parent=1 // pred_region
      %39 = dma.done [#allocation3], 256
    $region13: #{tpu_custom_call.1} parent=1 // pred_fallthru
      _
    // Predicated region
    $region14: #{tpu_custom_call.1} parent=1 // pred_check
      _
    $region15: #{tpu_custom_call.1} parent=1 // pred_check_branch
      %41 = sbr.rel (0) target = $region17
    $region16: #{tpu_custom_call.1} parent=1 // pred_region
      %43 = dma.done [#allocation6], 256
    $region17: #{tpu_custom_call.1} parent=1 // pred_fallthru
      _
    %p44 = scmp.eq.s32.totalorder 0, 0
    // Predicated region
    $region18: #{tpu_custom_call.1} parent=1 // pred_check
      %p45 = pneg %p44
    $region19: #{tpu_custom_call.1} parent=1 // pred_check_branch
      %47 = sbr.rel (%p45) target = $region21
    $region20: #{tpu_custom_call.1} parent=1 // pred_region
      %48 = vst [vmem:[#allocation7] sm:$0xff] 0.0
    $region21: #{tpu_custom_call.1} parent=1 // pred_fallthru
      _
    %v49 = vld [vmem:[#allocation7] sm:$0xff]
    %v50 = vld [vmem:[#allocation2] sm:$0xff]
    %v51 = vld [vmem:[#allocation5] sm:$0xff]
    %v52 = vmul.f32 %v50, %v50
    %v53 = vmul.f32 %v51, %v51
    %v54 = vsub.f32 %v52, %v53
    %v55 = vmul.f32 %v54, %v54
    %v56 = vadd.f32 %v55, 0.0
    %v57 = vld [vmem:[#allocation2 + $0x8] sm:$0xff]
    %v58 = vld [vmem:[#allocation5 + $0x8] sm:$0xff]
    %v59 = vmul.f32 %v57, %v57
    %v60 = vmul.f32 %v58, %v58
    %v61 = vsub.f32 %v59, %v60
    %v62 = vmul.f32 %v61, %v61
    %v63 = vadd.f32 %v56, %v62
    %v64 = vadd.f32 %v49, %v63
    %65 = vst [vmem:[#allocation7] sm:$0xff] %v64
    // Predicated region
    $region22: #{tpu_custom_call.1} parent=1 // pred_check
      _
    $region23: #{tpu_custom_call.1} parent=1 // pred_check_branch
      %67 = sbr.rel (0) target = $region25
    $region24: #{tpu_custom_call.1} parent=1 // pred_region
      %69 = vsyncadd [#allocation4], 0
      %s71 = sshll.u32 [#allocation7], 4
      %s72 = int_to_ptr.vmem [resolvable:$true] %s71
      %s73 = sshll.u32 %s2, 4
      %s74 = int_to_ptr.hbm [resolvable:$true] %s73
      %76 = dma.vmem_to_hbm [thread:$0]  %s72, 128, %s74, [#allocation4]
    $region25: #{tpu_custom_call.1} parent=1 // pred_fallthru
      _
    // Predicated region
    $region26: #{tpu_custom_call.1} parent=1 // pred_check
      _
    $region27: #{tpu_custom_call.1} parent=1 // pred_check_branch
      %78 = sbr.rel (0) target = $region29
    $region28: #{tpu_custom_call.1} parent=1 // pred_region
      %80 = dma.done [#allocation4], 128
    $region29: #{tpu_custom_call.1} parent=1 // pred_fallthru
      _
    %81 = vsyncpa [#allocation3], 1
    %82 = vsyncpa [#allocation6], 1
    %83 = vsyncpa [#allocation4], 1

</llo_original>
